<compile_context>
chip_gen: v6e
topology: v6e:2x2x1
jax: 0.10.0
libtpu: 0.0.40
codegen_flags: <defaults>
</compile_context>

<pallas_src>
import functools

import jax
import jax.numpy as jnp
from jax.experimental import pallas as pl
from jax.experimental.pallas import tpu as pltpu


def _hinge_kernel(t_ref, x_ref, psum_ref, *, true_b, tb):
    i = pl.program_id(0)

    # Upcast AFTER the DMA so bf16 inputs stream at 2 B/elem over HBM.
    x = x_ref[...].astype(jnp.float32)                   # (TB, C)
    t = t_ref[...]                                       # (TB, 1) int32

    # One-hot mask via lane-index iota compared against the label column.
    col = jax.lax.broadcasted_iota(jnp.int32, x.shape, 1)
    hit = col == t                                       # (TB, C) bool

    # pos = logit at the target class; neg = max over the row with the target
    # slot zeroed (matches (1 - onehot) * input in the torch reference).
    pos = jnp.sum(jnp.where(hit, x, 0.0), axis=-1, keepdims=True)   # (TB, 1)
    neg = jnp.max(jnp.where(hit, 0.0, x), axis=-1, keepdims=True)   # (TB, 1)

    hinge = jnp.maximum(neg - pos + 1.0, 0.0)            # (TB, 1)

    # Zero out rows that are pure batch padding (B rounded up to a tile).
    row = i * tb + jax.lax.broadcasted_iota(jnp.int32, hinge.shape, 0)
    hinge = jnp.where(row < true_b, hinge, 0.0)

    # Per-tile partial sum; the wrapper finishes the mean.
    psum_ref[0, 0] = jnp.sum(hinge)


def categorical_hinge_loss(logits: jax.Array, target: jax.Array,
                           *, tb: int | None = None,
                           vmem_limit_bytes: int = 48 * 1024 * 1024) -> jax.Array:
    """logits: (B, C) float, target: (B,) integer labels. Returns scalar f32."""
    B, C = logits.shape
    dtype_bytes = jnp.dtype(logits.dtype).itemsize

    if tb is None:
        # 2 pipeline buffers of the logits tile should use ~<= 1/4 of the
        # scoped VMEM limit (leaves headroom for labels + compiler scratch).
        budget = vmem_limit_bytes // 4
        tb = (budget // (2 * C * dtype_bytes)) // 8 * 8
        tb = int(max(8, min(tb, 1024)))
    b_aligned = -(-B // 8) * 8
    tb = int(min(tb, b_aligned))

    bp = -(-B // tb) * tb                  # batch padded to a multiple of tb
    num_tiles = bp // tb

    target_col = target.astype(jnp.int32).reshape(B, 1)
    if bp != B:
        logits = jnp.pad(logits, ((0, bp - B), (0, 0)))
        target_col = jnp.pad(target_col, ((0, bp - B), (0, 0)))

    kernel = functools.partial(_hinge_kernel, true_b=B, tb=tb)

    psums = pl.pallas_call(
        kernel,
        out_shape=jax.ShapeDtypeStruct((num_tiles, 1), jnp.float32),
        grid=(num_tiles,),
        in_specs=[
            pl.BlockSpec((tb, 1), lambda i: (i, 0)),     # labels (int32 column)
            pl.BlockSpec((tb, C), lambda i: (i, 0)),     # logits, native dtype
        ],
        out_specs=pl.BlockSpec((1, 1), lambda i: (i, 0),
                               memory_space=pltpu.MemorySpace.SMEM),
        compiler_params=pltpu.CompilerParams(
            dimension_semantics=("parallel",),
            vmem_limit_bytes=vmem_limit_bytes,
        ),
    )(target_col, logits)

    return jnp.sum(psums) / jnp.float32(B)


def _reference(logits, target):
    C = logits.shape[-1]
    onehot = jax.nn.one_hot(target, C, dtype=logits.dtype)
    pos = jnp.sum(onehot * logits, axis=-1)
    neg = jnp.max((1.0 - onehot) * logits, axis=-1)
    return jnp.mean(jnp.maximum(neg - pos + 1.0, 0.0))


if __name__ == "__main__":
    key = jax.random.PRNGKey(0)
    k1, k2, k3, k4, k5, k6 = jax.random.split(key, 6)

    # --- small aligned case (num_classes inferred from logits width) ---
    B, C = 8, 128
    logits = jax.random.normal(k1, (B, C), dtype=jnp.float32)
    target = jax.random.randint(k2, (B,), 0, C, dtype=jnp.int32)
    loss = categorical_hinge_loss(logits, target)
    jax.block_until_ready(loss)
    ref = _reference(logits, target)
    assert jnp.allclose(loss, ref, atol=1e-5, rtol=1e-5), (loss, ref)

    # --- non-multiple batch, multi-tile parallel grid (exercises padding) ---
    B2, C2 = 50, 128
    logits2 = jax.random.normal(k3, (B2, C2), dtype=jnp.float32)
    target2 = jax.random.randint(k4, (B2,), 0, C2, dtype=jnp.int32)
    loss2 = categorical_hinge_loss(logits2, target2, tb=16)
    jax.block_until_ready(loss2)
    ref2 = _reference(logits2, target2)
    assert jnp.allclose(loss2, ref2, atol=1e-5, rtol=1e-5), (loss2, ref2)

    # --- bf16 logits streamed natively, upcast in-kernel ---
    B3, C3 = 24, 128
    logits3 = jax.random.normal(k5, (B3, C3), dtype=jnp.float32).astype(jnp.bfloat16)
    target3 = jax.random.randint(k6, (B3,), 0, C3, dtype=jnp.int32)
    loss3 = categorical_hinge_loss(logits3, target3)
    jax.block_until_ready(loss3)
    ref3 = _reference(logits3.astype(jnp.float32), target3)
    assert jnp.allclose(loss3, ref3, atol=1e-5, rtol=1e-5), (loss3, ref3)

    print("KERNEL_OK")
</pallas_src>

<mosaic_0001>
module attributes {stable_mosaic.version = 11 : i64} {
  func.func @_hinge_kernel(%arg0: i32, %arg1: memref<8x1xi32, #tpu.memory_space<vmem>>, %arg2: memref<8x128xf32, #tpu.memory_space<vmem>>, %arg3: memref<1x1xf32, #tpu.memory_space<smem>>) attributes {dimension_semantics = [#tpu.dimension_semantics<parallel>], iteration_bounds = array<i64: 1>, scalar_prefetch = 0 : i64, scratch_operands = 0 : i64, tpu.core_type = #tpu.core_type<tc>, window_params = [{transform_indices = @transform_0, window_bounds = array<i64: 8, 1>}, {transform_indices = @transform_1, window_bounds = array<i64: 8, 128>}, {transform_indices = @transform_2, window_bounds = array<i64: 1, 1>}]} {
    %c0 = arith.constant 0 : index
    %c0_0 = arith.constant 0 : index
    %0 = vector.load %arg2[%c0, %c0_0] : memref<8x128xf32, #tpu.memory_space<vmem>>, vector<8x128xf32>
    %c0_1 = arith.constant 0 : index
    %c0_2 = arith.constant 0 : index
    %1 = vector.load %arg1[%c0_1, %c0_2] : memref<8x1xi32, #tpu.memory_space<vmem>>, vector<8x1xi32>
    %2 = tpu.iota {dimensions = array<i32: 1>} : vector<8x128xi32>
    %3 = vector.broadcast %1 : vector<8x1xi32> to vector<8x128xi32>
    %4 = arith.cmpi eq, %2, %3 : vector<8x128xi32>
    %cst = arith.constant 0.000000e+00 : f32
    %5 = vector.broadcast %cst : f32 to vector<8x128xf32>
    %6 = arith.select %4, %0, %5 : vector<8x128xi1>, vector<8x128xf32>
    %cst_3 = arith.constant dense<0.000000e+00> : vector<8xf32>
    %7 = vector.multi_reduction <add>, %6, %cst_3 [1] : vector<8x128xf32> to vector<8xf32>
    %8 = vector.shape_cast %7 : vector<8xf32> to vector<8x1xf32>
    %cst_4 = arith.constant 0.000000e+00 : f32
    %9 = vector.broadcast %cst_4 : f32 to vector<8x128xf32>
    %10 = arith.select %4, %9, %0 : vector<8x128xi1>, vector<8x128xf32>
    %cst_5 = arith.constant dense<0xFF800000> : vector<8xf32>
    %11 = vector.multi_reduction <maximumf>, %10, %cst_5 [1] : vector<8x128xf32> to vector<8xf32>
    %12 = vector.shape_cast %11 : vector<8xf32> to vector<8x1xf32>
    %13 = arith.subf %12, %8 : vector<8x1xf32>
    %cst_6 = arith.constant 1.000000e+00 : f32
    %14 = vector.broadcast %cst_6 : f32 to vector<8x1xf32>
    %15 = arith.addf %13, %14 : vector<8x1xf32>
    %cst_7 = arith.constant 0.000000e+00 : f32
    %16 = vector.broadcast %cst_7 : f32 to vector<8x1xf32>
    %17 = arith.maximumf %15, %16 : vector<8x1xf32>
    %c8_i32 = arith.constant 8 : i32
    %18 = arith.muli %arg0, %c8_i32 : i32
    %19 = tpu.iota {dimensions = array<i32: 0>} : vector<8x1xi32>
    %20 = vector.broadcast %18 : i32 to vector<8x1xi32>
    %21 = arith.addi %20, %19 : vector<8x1xi32>
    %c8_i32_8 = arith.constant 8 : i32
    %22 = vector.broadcast %c8_i32_8 : i32 to vector<8x1xi32>
    %23 = arith.cmpi slt, %21, %22 : vector<8x1xi32>
    %cst_9 = arith.constant 0.000000e+00 : f32
    %24 = vector.broadcast %cst_9 : f32 to vector<8x1xf32>
    %25 = arith.select %23, %17, %24 : vector<8x1xi1>, vector<8x1xf32>
    %26 = vector.shape_cast %25 : vector<8x1xf32> to vector<1x8x1xf32>
    %cst_10 = arith.constant dense<0.000000e+00> : vector<1xf32>
    %27 = vector.multi_reduction <add>, %26, %cst_10 [1, 2] : vector<1x8x1xf32> to vector<1xf32>
    %28 = vector.shape_cast %27 : vector<1xf32> to vector<1x1x1xf32>
    %29 = vector.extract %28[0, 0, 0] : f32 from vector<1x1x1xf32>
    %c0_11 = arith.constant 0 : index
    %c0_12 = arith.constant 0 : index
    %30 = memref.load %arg3[%c0_11, %c0_12] : memref<1x1xf32, #tpu.memory_space<smem>>
    memref.store %29, %arg3[%c0_11, %c0_12] : memref<1x1xf32, #tpu.memory_space<smem>>
    return
  }
  func.func @transform_0(%arg0: i32) -> (i32, i32) {
    %c0_i32 = arith.constant 0 : i32
    %c0_i32_0 = arith.constant 0 : i32
    return %arg0, %c0_i32 : i32, i32
  }
  func.func @transform_1(%arg0: i32) -> (i32, i32) {
    %c0_i32 = arith.constant 0 : i32
    %c0_i32_0 = arith.constant 0 : i32
    return %arg0, %c0_i32 : i32, i32
  }
  func.func @transform_2(%arg0: i32) -> (i32, i32) {
    %c0_i32 = arith.constant 0 : i32
    %c0_i32_0 = arith.constant 0 : i32
    return %arg0, %c0_i32 : i32, i32
  }
}

</mosaic_0001>

<llo_original>
// kernel: tpu_custom_call.1
$region0: #{tpu_custom_call.1}
  #allocation0 [shape = 'u32[]', space=smem, size = 0x4, offset = 0x4, fixed_abs, tag = 'smem constant byte address 0x4 - core index']
  #allocation1 [shape = 'u32[144,128]{1,0:T(1,128)}', space=vmem, size = 0x12000, scoped, tag = 'internal scratch']
  %s0 = inlined_call_operand.vmem [shape: s32[8,1], index: 0, kind: input, shape index: {}]
  %s1 = inlined_call_operand.vmem [shape: f32[8,128], index: 1, kind: input, shape index: {}]
  %s2 = inlined_call_operand.hbm [shape: f32[1,1], index: 2, kind: output, shape index: {}]
  %s3 = sld [smem:[#allocation0]]
  $region18: #{tpu_custom_call.1} parent=0
    _
  %s5 = ssub.s32 1, %s3
  %s6 = scalar_select 0, %s5, %s3
  $region1: #{tpu_custom_call.1} parent=0
    #allocation2 [shape = 'u8[512]{0}', space=smem, size = 0x200, scoped, tag = 'output window, operand 0, single buffered']
    #allocation3 [shape = 's32[1]{0}', space=sflag, size = 0x4, scoped, tag = 'scoped memory for tpu_custom_call.1']
    %7 = vsyncpa [#allocation3], 0
    // Predicated region
    $region2: #{tpu_custom_call.1} parent=1 // pred_check
      _
    $region3: #{tpu_custom_call.1} parent=1 // pred_check_branch
      %9 = sbr.rel (0) target = $region5
    $region4: #{tpu_custom_call.1} parent=1 // pred_region
      _
    $region5: #{tpu_custom_call.1} parent=1 // pred_fallthru
      _
    // Predicated region
    $region6: #{tpu_custom_call.1} parent=1 // pred_check
      _
    $region7: #{tpu_custom_call.1} parent=1 // pred_check_branch
      %11 = sbr.rel (0) target = $region9
    $region8: #{tpu_custom_call.1} parent=1 // pred_region
      _
    $region9: #{tpu_custom_call.1} parent=1 // pred_fallthru
      _
    %v12 = vld [vmem:[%s1] sm:$0xff]
    %v13 = vld [vmem:[%s0] sm:$0xff]
    %v14 = vlaneseq
    %v15 = vand.u32 %v14, 127
    %16 = vset.pattern.permute.xlu0 0
    %17 = vperm.xlu0 %16, %v13
    %v18 = vpop.permute.xlu0 %17
    %vm19 = vcmp.eq.s32.totalorder %v15, %v18
    %v20 = vsel %vm19, %v12, 0.0
    %21 = vadd.xlane.f32.xlu0 %v20
    %v22 = vpop.xlane.xlu0 %21
    %v23 = vsel %vm19, 0.0, %v12
    %24 = vmax.xlane.f32.xlu0 %v23
    %v25 = vpop.xlane.xlu0 %24
    %v26 = vsub.f32 %v25, %v22
    %v27 = vadd.f32 %v26, 1.0
    %v28 = vmax.f32 %v27, 0.0
    %s29 = smul.u32 0, 8
    %v30 = vlaneseq
    %v31 = vshrl.u32 %v30, 7
    %v32 = vstv %s29
    %v33 = vadd.s32 %v32, %v31
    %vm34 = vcmp.lt.s32.totalorder %v33, 8
    %v35 = vsel %vm34, %v28, 0.0
    %vm36 = vcmask 7168
    %v37 = vsel %vm36, %v35, 0.0
    %38 = vadd.xlane.f32.xlu0 %v37
    %v39 = vpop.xlane.xlu0 %38
    %v40 = vrot.slane %v39, 4
    %v41 = vadd.f32 %v39, %v40
    %v42 = vrot.slane %v41, 2
    %v43 = vadd.f32 %v41, %v42
    %v44 = vrot.slane %v43, 1
    %v45 = vadd.f32 %v43, %v44
    %s46 = vtos %v45
    %s47 = scalar_lea.smem [#allocation2], 0
    %48 = sst [smem:[%s47]] %s46
    // Predicated region
    $region10: #{tpu_custom_call.1} parent=1 // pred_check
      _
    $region11: #{tpu_custom_call.1} parent=1 // pred_check_branch
      %50 = sbr.rel (0) target = $region13
    $region12: #{tpu_custom_call.1} parent=1 // pred_region
      %s52 = ssub.s32 16, 16
      %53 = vsyncadd [#allocation3], %s52
      %56 = dma.smem_to_hbm [#allocation2], 16, %s2, [#allocation3]
    $region13: #{tpu_custom_call.1} parent=1 // pred_fallthru
      _
    // Predicated region
    $region14: #{tpu_custom_call.1} parent=1 // pred_check
      _
    $region15: #{tpu_custom_call.1} parent=1 // pred_check_branch
      %58 = sbr.rel (0) target = $region17
    $region16: #{tpu_custom_call.1} parent=1 // pred_region
      %59 = dma.done [#allocation3], 16
    $region17: #{tpu_custom_call.1} parent=1 // pred_fallthru
      _
    %60 = sfence
    %61 = vsyncpa [#allocation3], 1

</llo_original>
